<compile_context>
chip_gen: v5e
topology: v5e:2x2
jax: 0.10.0
libtpu: 0.0.40
codegen_flags: <defaults>
</compile_context>

<pallas_src>
import numpy as np
import jax
import jax.numpy as jnp
from jax.experimental import pallas as pl
from jax.experimental.pallas import tpu as pltpu

_STATS_LANES = 128  # lane-dense per-(mask,layer) stats: [bce_sum, dice_num, sig_sum, tgt_sum, 0...]


# --------------------------------------------------------------------------- #
# Pallas kernels
# --------------------------------------------------------------------------- #

def _neg_softmax_kernel(x_ref, o_ref):
    """out[r, k] = -softmax(x[r, :])[k]  (matcher class-cost; lanes padded with -1e30)."""
    x = x_ref[...]
    m = jnp.max(x, axis=-1, keepdims=True)
    e = jnp.exp(x - m)
    o_ref[...] = -(e / jnp.sum(e, axis=-1, keepdims=True))


def _cross_entropy_kernel(x_ref, cls_ref, w_ref, out_ref):
    """Weighted cross-entropy partial sums for ALL decoder layers (single block).
    out[l, 0] = sum_i w[y_i]*(lse_i - x_i[y_i]), out[l, 1] = sum_i w[y_i];
    loss_ce[l] = out[l,0]/out[l,1] == F.cross_entropy(x.transpose(1,2), tgt, w)."""
    x = x_ref[...]                                        # (L, BQ, Kp) f32, pad lanes = -1e30
    cls = cls_ref[...]                                    # (L, BQ) int32
    w = w_ref[...].reshape(1, 1, -1)                      # (1, 1, Kp), pad lanes = 0
    kiota = jax.lax.broadcasted_iota(jnp.int32, x.shape, 2)
    oh = (kiota == cls[:, :, None]).astype(jnp.float32)   # one_hot(target), built in-kernel
    m = jnp.max(x, axis=-1, keepdims=True)
    lse = jnp.log(jnp.sum(jnp.exp(x - m), axis=-1)) + jnp.max(x, axis=-1)   # (L, BQ)
    tl = jnp.sum(oh * x, axis=-1)                         # (L, BQ) logit at target class
    wr = jnp.sum(oh * w, axis=-1)                         # (L, BQ) weight at target class
    num = jnp.sum(wr * (lse - tl), axis=-1, keepdims=True)                  # (L, 1)
    den = jnp.sum(wr, axis=-1, keepdims=True)                               # (L, 1)
    lane = jax.lax.broadcasted_iota(jnp.int32, out_ref.shape, 1)            # (L, 128)
    out_ref[...] = jnp.where(lane == 0, num, 0.0) + jnp.where(lane == 1, den, 0.0)


def _mask_loss_kernel(srcT_ref, ah_ref, awt_ref, tgt_ref, stats_ref):
    """grid = (mask-block m [parallel], upsampled-row tile t [arbitrary]).

    Per step: separable 4x bilinear upsample of NB*L low-res predicted masks for
    this row tile (batched bf16 MXU einsum over Hm + one flat bf16 MXU matmul
    over Wm), fused BCE-with-logits + sigmoid (single shared EUP exp) against the
    bf16 target tile (read once for all L layers), and accumulation of per-
    (mask,layer) stats into a lane-dense (NB, L, 128) VMEM-resident output block.
    """
    t = pl.program_id(1)

    @pl.when(t == 0)
    def _init():
        stats_ref[...] = jnp.zeros_like(stats_ref)

    nb, L, Wm, Hm = srcT_ref.shape
    th = ah_ref.shape[0]
    W = awt_ref.shape[1]
    nbl = nb * L

    srcT = srcT_ref[...].reshape(nbl, Wm, Hm)                       # bf16
    ah_t = jnp.broadcast_to(ah_ref[...][None], (nbl, th, Hm))       # bf16 (th, Hm) tile
    # H-upsample (contract Hm, last dim on both operands -> batched MXU matmul)
    x1 = jnp.einsum('brh,bwh->brw', ah_t, srcT,
                    preferred_element_type=jnp.float32)             # (NB*L, th, Wm)
    # W-upsample: one flat MXU matmul, M = NB*L*th
    up = jnp.dot(x1.reshape(nbl * th, Wm).astype(jnp.bfloat16), awt_ref[...],
                 preferred_element_type=jnp.float32).reshape(nb, L, th, W)

    tgt = tgt_ref[...].astype(jnp.float32)                          # (NB, th, W), binary
    tgt_b = tgt[:, None, :, :]                                      # broadcast over L

    # BCE-with-logits and sigmoid sharing a single EUP exp
    e = jnp.exp(-jnp.abs(up))
    bce = jnp.maximum(up, 0.0) - up * tgt_b + jnp.log(1.0 + e)
    r = pl.reciprocal(1.0 + e, approx=False)
    s = jnp.where(up >= 0.0, r, e * r)                              # sigmoid(up)

    bce_s = jnp.sum(jnp.sum(bce, axis=-1), axis=-1)                 # (NB, L)
    num_s = jnp.sum(jnp.sum(s * tgt_b, axis=-1), axis=-1)           # (NB, L)
    sig_s = jnp.sum(jnp.sum(s, axis=-1), axis=-1)                   # (NB, L)
    tgt_s = jnp.sum(jnp.sum(tgt, axis=-1), axis=-1, keepdims=True)  # (NB, 1)

    lane = jax.lax.broadcasted_iota(jnp.int32, stats_ref.shape, 2)  # (NB, L, 128)
    stats_ref[...] += (jnp.where(lane == 0, bce_s[:, :, None], 0.0)
                       + jnp.where(lane == 1, num_s[:, :, None], 0.0)
                       + jnp.where(lane == 2, sig_s[:, :, None], 0.0)
                       + jnp.where(lane == 3, tgt_s[:, :, None], 0.0))


# --------------------------------------------------------------------------- #
# Kernel wrappers
# --------------------------------------------------------------------------- #

def neg_softmax_all(logits_all):
    """-softmax over the class axis for ALL layers/images in ONE lane-padded call."""
    L, B, Q, K = logits_all.shape
    R = L * B * Q
    Kp = ((K + 127) // 128) * 128
    x = jnp.full((R, Kp), -1e30, jnp.float32)
    x = x.at[:, :K].set(logits_all.reshape(R, K).astype(jnp.float32))
    out = pl.pallas_call(
        _neg_softmax_kernel,
        out_shape=jax.ShapeDtypeStruct((R, Kp), jnp.float32),
    )(x)
    return out[:, :K].reshape(L, B, Q, K)


def cross_entropy_all(logits_all, target_classes, weight):
    """Per-layer weighted-mean cross entropy for all L layers in one single-block call."""
    L, B, Q, K = logits_all.shape
    BQ = B * Q
    Kp = ((K + 127) // 128) * 128
    x = jnp.full((L, BQ, Kp), -1e30, jnp.float32)
    x = x.at[:, :, :K].set(logits_all.reshape(L, BQ, K).astype(jnp.float32))
    cls = jnp.asarray(target_classes, jnp.int32).reshape(L, BQ)
    w = jnp.zeros((1, Kp), jnp.float32).at[:, :K].set(
        jnp.asarray(weight, jnp.float32).reshape(1, K))
    out = pl.pallas_call(
        _cross_entropy_kernel,
        out_shape=jax.ShapeDtypeStruct((L, _STATS_LANES), jnp.float32),
    )(x, cls, w)
    return out[:, 0] / out[:, 1]


def _mask_vmem_estimate(nb, th, L, Hm, Wm, W):
    """Conservative per-step VMEM footprint (bytes) for the mask-loss kernel."""
    return (2 * nb * th * W * 2            # tgt tile, double-buffered, bf16
            + 2 * nb * L * Wm * Hm * 2     # src tile, double-buffered, bf16
            + 2 * th * Hm * 2              # ah tile
            + 2 * Wm * W * 2               # awt
            + 3 * nb * L * th * W * 4      # f32 intermediates (up / bce / sigmoid)
            + 2 * nb * L * _STATS_LANES * 4)


def _choose_tiles(N, L, Hm, Wm, H, W, budget_bytes=16 * 1024 * 1024,
                  nb_override=None, th_override=None):
    """Pick (masks-per-step NB, row tile th) under a VMEM byte budget (v7x-safe)."""
    ths = [H] + [t for t in (2048, 1024, 512, 256, 128, 64, 32)
                 if t < H and H % t == 0]
    nb_cap = max(1, min(16, -(-N // 2)))   # keep >=2 mask blocks for 2-TC balance
    nbs = [n for n in (16, 8, 4, 2, 1) if n <= nb_cap] or [1]
    if th_override is not None:
        ths = [int(th_override)]
    if nb_override is not None:
        nbs = [int(nb_override)]
    for nb in nbs:                         # maximize masks/step first, then row tile
        for th in ths:
            if _mask_vmem_estimate(nb, th, L, Hm, Wm, W) <= budget_bytes:
                return nb, th
    return nbs[-1], ths[-1]


def mask_losses_all(srcT, tgt_masks, ah, awt, nb, th):
    """Per-(GT mask, layer) stats (Npad, L, 128): lanes 0..3 = bce_sum, dice_num,
    sigmoid_sum, target_sum.  srcT is (Npad, L, Wm, Hm) bf16 (pre-transposed),
    tgt_masks is (Npad, H, W) bf16 (binary, read once for all layers)."""
    Np, L, Wm, Hm = srcT.shape
    _, H, W = tgt_masks.shape
    assert Np % nb == 0 and H % th == 0
    est = _mask_vmem_estimate(nb, th, L, Hm, Wm, W)
    vmem_limit = int(min(32 * 1024 * 1024, max(16 * 1024 * 1024, 2 * est)))
    return pl.pallas_call(
        _mask_loss_kernel,
        out_shape=jax.ShapeDtypeStruct((Np, L, _STATS_LANES), jnp.float32),
        grid_spec=pltpu.PrefetchScalarGridSpec(
            num_scalar_prefetch=0,
            grid=(Np // nb, H // th),   # mask blocks (parallel) x row tiles (reduction, last)
            in_specs=[pl.BlockSpec((nb, L, Wm, Hm), lambda m, t: (m, 0, 0, 0)),
                      pl.BlockSpec((th, Hm), lambda m, t: (t, 0)),
                      pl.BlockSpec((Wm, W), lambda m, t: (0, 0)),
                      pl.BlockSpec((nb, th, W), lambda m, t: (m, t, 0))],
            out_specs=pl.BlockSpec((nb, L, _STATS_LANES), lambda m, t: (m, 0, 0)),
        ),
        compiler_params=pltpu.CompilerParams(
            dimension_semantics=("parallel", "arbitrary"),
            vmem_limit_bytes=vmem_limit,
        ),
    )(srcT, ah, awt, tgt_masks)


# --------------------------------------------------------------------------- #
# Host-side helpers
# --------------------------------------------------------------------------- #

def _bilinear_matrix(out_size, in_size, scale):
    """Row-interpolation matrix matching F.interpolate(mode='bilinear',
    scale_factor=scale, align_corners=False).  For scale=4 every weight is a
    multiple of 1/8 and is exactly representable in bf16."""
    A = np.zeros((out_size, in_size), dtype=np.float32)
    for o in range(out_size):
        src = (o + 0.5) / scale - 0.5
        src = max(src, 0.0)                     # PyTorch clamps negative src to 0
        i0 = min(int(np.floor(src)), in_size - 1)
        i1 = min(i0 + 1, in_size - 1)
        lam = src - i0
        A[o, i0] += 1.0 - lam
        A[o, i1] += lam
    return A


def _linear_sum_assignment(cost):
    """O(n^3) Hungarian (shortest augmenting path).  Returns (row_ind, col_ind)
    with row_ind sorted ascending (same convention as scipy)."""
    cost = np.asarray(cost, dtype=np.float64)
    transposed = cost.shape[0] > cost.shape[1]
    C = cost.T if transposed else cost
    n, m = C.shape
    u = np.zeros(n)
    v = np.zeros(m + 1)
    p = np.full(m + 1, -1, dtype=np.int64)      # p[j]: row matched to column j (m = virtual)
    for i in range(n):
        p[m] = i
        j0 = m
        minv = np.full(m, np.inf)
        way = np.zeros(m, dtype=np.int64)
        used = np.zeros(m + 1, dtype=bool)
        while True:
            used[j0] = True
            i0 = int(p[j0])
            cur = C[i0, :] - u[i0] - v[:m]
            better = (~used[:m]) & (cur < minv)
            minv = np.where(better, cur, minv)
            way = np.where(better, j0, way)
            cand = np.where(used[:m], np.inf, minv)
            j1 = int(np.argmin(cand))
            delta = float(cand[j1])
            uc = used[:m]
            u[p[:m][uc]] += delta
            u[int(p[m])] += delta
            v[:m][uc] -= delta
            v[m] -= delta
            minv = np.where(uc, minv, minv - delta)
            j0 = j1
            if p[j0] == -1:
                break
        while j0 != m:                           # augment along alternating path
            j1 = int(way[j0])
            p[j0] = p[j1]
            j0 = j1
    rows = p[:m]
    cols = np.arange(m)
    keep = rows >= 0
    rows, cols = rows[keep], cols[keep]
    if transposed:
        rows, cols = cols, rows
    order = np.argsort(rows)
    return rows[order].astype(np.int64), cols[order].astype(np.int64)


# --------------------------------------------------------------------------- #
# Loss module
# --------------------------------------------------------------------------- #

class Mask2FormerLossPallas:
    def __init__(self, num_classes=19, weight_dict=None,
                 losses=('labels', 'masks'), aux_loss_weight=0.1,
                 mask_row_tile=None, mask_batch=None):
        self.num_classes = num_classes
        self.weight_dict = weight_dict or {'loss_mask': 1.0, 'loss_dice': 1.0,
                                           'loss_ce': 0.4}
        self.losses = list(losses)
        self.aux_loss_weight = aux_loss_weight
        self.mask_row_tile = mask_row_tile
        self.mask_batch = mask_batch
        self.empty_weight = jnp.ones((num_classes + 1,), jnp.float32)
        # MaskHungarianMatcher defaults: cost_class=cost_mask=cost_dice=1, num_points=0.
        # With num_points=0 the point-sampled sigmoid-CE / dice matching costs are
        # identically zero, so the matching cost is exactly -softmax(logits)[:, tgt].
        self.cost_class = 1.0
        self._bilin_cache = {}

    # ---- preprocess_gt_semantic ------------------------------------------- #
    def preprocess_gt_semantic(self, targets):
        # TODO(synk): variable-length per-image class extraction is inherently host-side.
        tgt = np.asarray(jax.device_get(targets))
        B, C, _, _ = tgt.shape
        new_targets = []
        for b in range(B):
            masks, labels = [], []
            for c in range(C):
                if tgt[b, c].sum() > 0:
                    masks.append(tgt[b, c])
                    labels.append(c)
            if len(masks) == 0:
                masks = [np.zeros_like(tgt[b, 0])]
                labels = [C]
            new_targets.append({'labels': np.asarray(labels, np.int64),
                                'masks': np.stack(masks, 0).astype(np.float32)})
        return new_targets

    def _up_matrices(self, H, Hm, W, Wm):
        key = (H, Hm, W, Wm)
        if key not in self._bilin_cache:
            ah = jnp.asarray(_bilinear_matrix(H, Hm, 4.0), dtype=jnp.bfloat16)       # (H, Hm)
            awt = jnp.asarray(_bilinear_matrix(W, Wm, 4.0).T, dtype=jnp.bfloat16)    # (Wm, W)
            self._bilin_cache[key] = (ah, awt)
        return self._bilin_cache[key]

    # ---- forward ----------------------------------------------------------- #
    def __call__(self, outputs, targets):
        targets = self.preprocess_gt_semantic(targets)
        B = len(targets)

        layers = [{'pred_logits': outputs['pred_logits'],
                   'pred_masks': outputs['pred_masks']}]
        layers += list(outputs.get('aux_outputs', []))
        L = len(layers)

        logits_all = jnp.stack([lay['pred_logits'] for lay in layers], 0).astype(jnp.float32)
        masks_all = jnp.stack([lay['pred_masks'] for lay in layers], 0)
        _, _, Q, K = logits_all.shape
        Hm, Wm = masks_all.shape[-2:]
        H, W = 4 * Hm, 4 * Wm

        # ---- matcher class-cost: ONE Pallas launch for all layers & images,
        #      followed by ONE device->host transfer ----------------------------
        neg_prob = neg_softmax_all(logits_all)                          # (L,B,Q,K)

        counts = [len(t['labels']) for t in targets]
        offsets = np.concatenate([[0], np.cumsum(counts)]).astype(np.int64)
        N = int(offsets[-1])

        do_masks = 'masks' in self.losses
        nb, th = _choose_tiles(N, L, Hm, Wm, H, W,
                               nb_override=self.mask_batch,
                               th_override=self.mask_row_tile)
        n_pad = -(-N // nb) * nb

        if do_masks:
            # stage GT masks on device now (binary -> bf16, exact, half the bytes);
            # the H2D transfer overlaps the host-side Hungarian solve below.
            tgt_np = np.zeros((n_pad, H, W), dtype=jnp.bfloat16)
            tgt_np[:N] = np.concatenate([t['masks'] for t in targets], 0)
            tgt_masks_dev = jnp.asarray(tgt_np)                          # (Npad,H,W) bf16

        neg_prob_host = np.asarray(jax.device_get(neg_prob))            # single sync point

        # ---- Hungarian assignment per (layer, image) on host -------------------
        # TODO(synk): linear_sum_assignment has no Pallas equivalent; solved on host
        # with an O(n^3) shortest-augmenting-path implementation.
        target_classes = np.full((L, B, Q), self.num_classes, np.int32)
        src_perm = np.zeros((n_pad, L), np.int32)   # flat index into (L*B*Q) pred masks
        for l in range(L):
            for b in range(B):
                labels = targets[b]['labels']
                cost = self.cost_class * neg_prob_host[l, b][:, labels]   # (Q, T_b)
                src, tgt = _linear_sum_assignment(cost)
                # TODO(synk): assumes every GT mask is matched (T_b <= Q); true for
                # standard Mask2Former configs (Q >> num_classes).
                assert len(src) == len(labels), "more GT masks than queries unsupported"
                target_classes[l, b, src] = labels[tgt].astype(np.int32)
                g = offsets[b] + tgt
                src_perm[g, l] = l * B * Q + b * Q + src

        # ---- losses: all layers batched into single Pallas launches ------------
        if 'labels' in self.losses:
            loss_ce = cross_entropy_all(logits_all, target_classes,
                                        self.empty_weight)               # (L,)
        else:
            loss_ce = jnp.zeros((L,), jnp.float32)

        if do_masks:
            # gather ONLY the tiny low-res predicted masks (re-ordered by GT mask
            # index so the huge target masks need no gather / duplication at all),
            # transpose to (Npad, L, Wm, Hm) and cast to bf16 for the MXU.
            masks_flat = masks_all.reshape(L * B * Q, Hm, Wm)
            srcT = jnp.take(masks_flat, jnp.asarray(src_perm.reshape(-1)), axis=0)
            srcT = jnp.transpose(srcT.reshape(n_pad, L, Hm, Wm),
                                 (0, 1, 3, 2)).astype(jnp.bfloat16)
            ah, awt = self._up_matrices(H, Hm, W, Wm)
            stats = mask_losses_all(srcT, tgt_masks_dev, ah, awt, nb, th)  # (Npad,L,128)
            stats = stats[:N]                                              # drop padding
            loss_mask = jnp.sum(stats[:, :, 0], axis=0) / float(N * H * W)  # (L,)
            dice = 1.0 - (2.0 * stats[:, :, 1] + 1.0) / (stats[:, :, 2] + stats[:, :, 3] + 1.0)
            loss_dice = jnp.mean(dice, axis=0)                              # (L,)
        else:
            loss_mask = jnp.zeros((L,), jnp.float32)
            loss_dice = jnp.zeros((L,), jnp.float32)

        wd = self.weight_dict
        per_layer = (wd.get('loss_ce', 0.0) * loss_ce
                     + wd.get('loss_mask', 0.0) * loss_mask
                     + wd.get('loss_dice', 0.0) * loss_dice)               # (L,)
        final_loss = per_layer[0]
        num_aux = L - 1
        if num_aux > 0:  # reference divides by num_aux (crashes when 0); guard it
            final_loss = final_loss + self.aux_loss_weight * jnp.sum(per_layer[1:]) / num_aux
        return final_loss


# --------------------------------------------------------------------------- #
if __name__ == "__main__":
    key = jax.random.PRNGKey(0)
    B, Q, num_classes = 2, 8, 19
    K = num_classes + 1
    Hm = Wm = 16
    H, W = 4 * Hm, 4 * Wm
    num_aux = 2

    keys = jax.random.split(key, 3 + 2 * num_aux)
    pred_logits = jax.random.normal(keys[0], (B, Q, K), jnp.float32)
    pred_masks = jax.random.normal(keys[1], (B, Q, Hm, Wm), jnp.float32)
    aux_outputs = []
    for a in range(num_aux):
        aux_outputs.append({
            'pred_logits': jax.random.normal(keys[3 + 2 * a], (B, Q, K), jnp.float32),
            'pred_masks': jax.random.normal(keys[4 + 2 * a], (B, Q, Hm, Wm), jnp.float32),
        })

    # semantic GT: label map with a few active classes -> one-hot, NCHW
    label_map = jax.random.randint(keys[2], (B, H, W), 0, 4)
    gt_semantic = jnp.transpose(
        jax.nn.one_hot(label_map, num_classes, dtype=jnp.float32), (0, 3, 1, 2))

    outputs = {
        'pred_logits': pred_logits,
        'pred_masks': pred_masks,
        'aux_outputs': aux_outputs,
    }

    # mask_row_tile=32 -> 2 row tiles at H=64, and ~8 GT masks -> 2 mask blocks,
    # exercising both the "parallel" mask-block axis and the accumulate-across-
    # "arbitrary"-row-tile path of the batched mask kernel.
    criterion = Mask2FormerLossPallas(num_classes=num_classes, mask_row_tile=32)
    final_loss = criterion(outputs, gt_semantic)
    jax.block_until_ready(final_loss)
    assert bool(jnp.isfinite(final_loss))
    print("KERNEL_OK")
</pallas_src>

<mosaic_0001>
module attributes {stable_mosaic.version = 11 : i64} {
  func.func @_neg_softmax_kernel(%arg0: memref<48x128xf32, #tpu.memory_space<vmem>>, %arg1: memref<48x128xf32, #tpu.memory_space<vmem>>) attributes {dimension_semantics = [], scalar_prefetch = 0 : i64, scratch_operands = 0 : i64, tpu.core_type = #tpu.core_type<tc>} {
    %c0 = arith.constant 0 : index
    %c0_0 = arith.constant 0 : index
    %0 = vector.load %arg0[%c0, %c0_0] : memref<48x128xf32, #tpu.memory_space<vmem>>, vector<48x128xf32>
    %cst = arith.constant dense<0xFF800000> : vector<48xf32>
    %1 = vector.multi_reduction <maximumf>, %0, %cst [1] : vector<48x128xf32> to vector<48xf32>
    %2 = vector.shape_cast %1 : vector<48xf32> to vector<48x1xf32>
    %3 = vector.broadcast %2 : vector<48x1xf32> to vector<48x128xf32>
    %4 = arith.subf %0, %3 : vector<48x128xf32>
    %5 = math.exp %4 : vector<48x128xf32>
    %cst_1 = arith.constant dense<0.000000e+00> : vector<48xf32>
    %6 = vector.multi_reduction <add>, %5, %cst_1 [1] : vector<48x128xf32> to vector<48xf32>
    %7 = vector.shape_cast %6 : vector<48xf32> to vector<48x1xf32>
    %8 = vector.broadcast %7 : vector<48x1xf32> to vector<48x128xf32>
    %9 = arith.divf %5, %8 : vector<48x128xf32>
    %cst_2 = arith.constant 0.000000e+00 : f32
    %10 = vector.broadcast %cst_2 : f32 to vector<48x128xf32>
    %11 = arith.subf %10, %9 : vector<48x128xf32>
    %c0_3 = arith.constant 0 : index
    %c0_4 = arith.constant 0 : index
    %12 = vector.load %arg1[%c0_3, %c0_4] : memref<48x128xf32, #tpu.memory_space<vmem>>, vector<48x128xf32>
    tpu.vector_store %arg1[%c0_3, %c0_4], %11 {strides = array<i32>} : memref<48x128xf32, #tpu.memory_space<vmem>>, vector<48x128xf32>,
    return
  }
}

</mosaic_0001>

<llo_original>
// kernel: tpu_custom_call.1
$region0: #{tpu_custom_call.1}
  #allocation0 [shape = 'u32[]', space=smem, size = 0x4, offset = 0x4, fixed_abs, tag = 'smem constant byte address 0x4 - core index']
  #allocation1 [shape = 'u32[72,128]{1,0:T(1,128)}', space=vmem, size = 0x9000, scoped, tag = 'internal scratch']
  %s0 = inlined_call_operand.hbm [shape: f32[48,128], index: 0, kind: input, shape index: {}]
  %s1 = inlined_call_operand.hbm [shape: f32[48,128], index: 1, kind: output, shape index: {}]
  %s2 = sld [smem:[#allocation0]]
  $region18: #{tpu_custom_call.1} parent=0
    _
  %s4 = ssub.s32 1, %s2
  %s5 = scalar_select 0, %s4, %s2
  $region1: #{tpu_custom_call.1} parent=0
    #allocation2 [shape = 'u8[24576]{0}', space=vmem, size = 0x6000, scoped, tag = 'input window, operand 0, single buffered']
    #allocation3 [shape = 's32[1]{0}', space=sflag, size = 0x4, scoped, tag = 'scoped memory for tpu_custom_call.1']
    #allocation4 [shape = 's32[1]{0}', space=sflag, size = 0x4, scoped, tag = 'scoped memory for tpu_custom_call.1']
    #allocation5 [shape = 'u8[24576]{0}', space=vmem, size = 0x6000, scoped, tag = 'output window, operand 0, single buffered']
    %6 = vsyncpa [#allocation3], 0
    %7 = vsyncpa [#allocation4], 0
    // Predicated region
    $region2: #{tpu_custom_call.1} parent=1 // pred_check
      _
    $region3: #{tpu_custom_call.1} parent=1 // pred_check_branch
      %9 = sbr.rel (0) target = $region5
    $region4: #{tpu_custom_call.1} parent=1 // pred_region
      %11 = vsyncadd [#allocation3], 0
      %s12 = sshll.u32 %s0, 4
      %s13 = int_to_ptr.hbm [resolvable:$true] %s12
      %s14 = sshll.u32 [#allocation2], 4
      %s15 = int_to_ptr.vmem [resolvable:$true] %s14
      %20 = dma.hbm_to_vmem [thread:$0]  %s13, 768, %s15, [#allocation3], 128, 128, 8
    $region5: #{tpu_custom_call.1} parent=1 // pred_fallthru
      _
    // Predicated region
    $region6: #{tpu_custom_call.1} parent=1 // pred_check
      _
    $region7: #{tpu_custom_call.1} parent=1 // pred_check_branch
      %22 = sbr.rel (0) target = $region9
    $region8: #{tpu_custom_call.1} parent=1 // pred_region
      %24 = dma.done [#allocation3], 768
    $region9: #{tpu_custom_call.1} parent=1 // pred_fallthru
      _
    %v25 = vld [vmem:[#allocation2] sm:$0xff]
    %v26 = vld [vmem:[#allocation2 + $0x8] sm:$0xff]
    %v27 = vld [vmem:[#allocation2 + $0x10] sm:$0xff]
    %v28 = vld [vmem:[#allocation2 + $0x18] sm:$0xff]
    %v29 = vld [vmem:[#allocation2 + $0x20] sm:$0xff]
    %v30 = vld [vmem:[#allocation2 + $0x28] sm:$0xff]
    %31 = vmax.xlane.f32.xlu0 %v25
    %v32 = vpop.xlane.xlu0 %31
    %33 = vmax.xlane.f32.xlu0 %v26
    %v34 = vpop.xlane.xlu0 %33
    %35 = vmax.xlane.f32.xlu0 %v27
    %v36 = vpop.xlane.xlu0 %35
    %37 = vmax.xlane.f32.xlu0 %v28
    %v38 = vpop.xlane.xlu0 %37
    %39 = vmax.xlane.f32.xlu0 %v29
    %v40 = vpop.xlane.xlu0 %39
    %41 = vmax.xlane.f32.xlu0 %v30
    %v42 = vpop.xlane.xlu0 %41
    %v43 = vsub.f32 %v25, %v32
    %v44 = vsub.f32 %v26, %v34
    %v45 = vsub.f32 %v27, %v36
    %v46 = vsub.f32 %v28, %v38
    %v47 = vsub.f32 %v29, %v40
    %v48 = vsub.f32 %v30, %v42
    %v49 = vmul.f32 %v43, 1.442695
    %v50 = vpow.pop %v49
    %v51 = vmul.f32 %v44, 1.442695
    %v52 = vpow.pop %v51
    %v53 = vmul.f32 %v45, 1.442695
    %v54 = vpow.pop %v53
    %v55 = vmul.f32 %v46, 1.442695
    %v56 = vpow.pop %v55
    %v57 = vmul.f32 %v47, 1.442695
    %v58 = vpow.pop %v57
    %v59 = vmul.f32 %v48, 1.442695
    %v60 = vpow.pop %v59
    %61 = vadd.xlane.f32.xlu0 %v50
    %v62 = vpop.xlane.xlu0 %61
    %63 = vadd.xlane.f32.xlu0 %v52
    %v64 = vpop.xlane.xlu0 %63
    %65 = vadd.xlane.f32.xlu0 %v54
    %v66 = vpop.xlane.xlu0 %65
    %67 = vadd.xlane.f32.xlu0 %v56
    %v68 = vpop.xlane.xlu0 %67
    %69 = vadd.xlane.f32.xlu0 %v58
    %v70 = vpop.xlane.xlu0 %69
    %71 = vadd.xlane.f32.xlu0 %v60
    %v72 = vpop.xlane.xlu0 %71
    %v73 = vrcp.pop %v62
    %v74 = vmul.f32 %v62, %v73
    %v75 = vsub.f32 1.0, %v74
    %v76 = vmul.f32 %v73, %v75
    %v77 = vadd.f32 %v73, %v76
    %vm78 = vweird.f32 %v62
    %vm79 = vweird.f32 %v73
    %vm80 = vmor %vm78, %vm79
    %v81 = vsel %vm80, %v73, %v77
    %v82 = vand.u32 2147483647, %v62
    %vm83 = vcmp.eq.f32.partialorder %v82, 8.507059e+37
    %v84 = vand.u32 %v62, 2147483648
    %v85 = vor.u32 1.1754944e-38, %v84
    %v86 = vsel %vm83, %v85, %v81
    %v87 = vmul.f32 %v50, %v86
    %v88 = vrcp.pop %v64
    %v89 = vmul.f32 %v64, %v88
    %v90 = vsub.f32 1.0, %v89
    %v91 = vmul.f32 %v88, %v90
    %v92 = vadd.f32 %v88, %v91
    %vm93 = vweird.f32 %v64
    %vm94 = vweird.f32 %v88
    %vm95 = vmor %vm93, %vm94
    %v96 = vsel %vm95, %v88, %v92
    %v97 = vand.u32 2147483647, %v64
    %vm98 = vcmp.eq.f32.partialorder %v97, 8.507059e+37
    %v99 = vand.u32 %v64, 2147483648
    %v100 = vor.u32 1.1754944e-38, %v99
    %v101 = vsel %vm98, %v100, %v96
    %v102 = vmul.f32 %v52, %v101
    %v103 = vrcp.pop %v66
    %v104 = vmul.f32 %v66, %v103
    %v105 = vsub.f32 1.0, %v104
    %v106 = vmul.f32 %v103, %v105
    %v107 = vadd.f32 %v103, %v106
    %vm108 = vweird.f32 %v66
    %vm109 = vweird.f32 %v103
    %vm110 = vmor %vm108, %vm109
    %v111 = vsel %vm110, %v103, %v107
    %v112 = vand.u32 2147483647, %v66
    %vm113 = vcmp.eq.f32.partialorder %v112, 8.507059e+37
    %v114 = vand.u32 %v66, 2147483648
    %v115 = vor.u32 1.1754944e-38, %v114
    %v116 = vsel %vm113, %v115, %v111
    %v117 = vmul.f32 %v54, %v116
    %v118 = vrcp.pop %v68
    %v119 = vmul.f32 %v68, %v118
    %v120 = vsub.f32 1.0, %v119
    %v121 = vmul.f32 %v118, %v120
    %v122 = vadd.f32 %v118, %v121
    %vm123 = vweird.f32 %v68
    %vm124 = vweird.f32 %v118
    %vm125 = vmor %vm123, %vm124
    %v126 = vsel %vm125, %v118, %v122
    %v127 = vand.u32 2147483647, %v68
    %vm128 = vcmp.eq.f32.partialorder %v127, 8.507059e+37
    %v129 = vand.u32 %v68, 2147483648
    %v130 = vor.u32 1.1754944e-38, %v129
    %v131 = vsel %vm128, %v130, %v126
    %v132 = vmul.f32 %v56, %v131
    %v133 = vrcp.pop %v70
    %v134 = vmul.f32 %v70, %v133
    %v135 = vsub.f32 1.0, %v134
    %v136 = vmul.f32 %v133, %v135
    %v137 = vadd.f32 %v133, %v136
    %vm138 = vweird.f32 %v70
    %vm139 = vweird.f32 %v133
    %vm140 = vmor %vm138, %vm139
    %v141 = vsel %vm140, %v133, %v137
    %v142 = vand.u32 2147483647, %v70
    %vm143 = vcmp.eq.f32.partialorder %v142, 8.507059e+37
    %v144 = vand.u32 %v70, 2147483648
    %v145 = vor.u32 1.1754944e-38, %v144
    %v146 = vsel %vm143, %v145, %v141
    %v147 = vmul.f32 %v58, %v146
    %v148 = vrcp.pop %v72
    %v149 = vmul.f32 %v72, %v148
    %v150 = vsub.f32 1.0, %v149
    %v151 = vmul.f32 %v148, %v150
    %v152 = vadd.f32 %v148, %v151
    %vm153 = vweird.f32 %v72
    %vm154 = vweird.f32 %v148
    %vm155 = vmor %vm153, %vm154
    %v156 = vsel %vm155, %v148, %v152
    %v157 = vand.u32 2147483647, %v72
    %vm158 = vcmp.eq.f32.partialorder %v157, 8.507059e+37
    %v159 = vand.u32 %v72, 2147483648
    %v160 = vor.u32 1.1754944e-38, %v159
    %v161 = vsel %vm158, %v160, %v156
    %v162 = vmul.f32 %v60, %v161
    %v163 = vsub.f32 0.0, %v87
    %v164 = vsub.f32 0.0, %v102
    %v165 = vsub.f32 0.0, %v117
    %v166 = vsub.f32 0.0, %v132
    %v167 = vsub.f32 0.0, %v147
    %v168 = vsub.f32 0.0, %v162
    %169 = vst [vmem:[#allocation5] sm:$0xff] %v163
    %170 = vst [vmem:[#allocation5 + $0x8] sm:$0xff] %v164
    %171 = vst [vmem:[#allocation5 + $0x10] sm:$0xff] %v165
    %172 = vst [vmem:[#allocation5 + $0x18] sm:$0xff] %v166
    %173 = vst [vmem:[#allocation5 + $0x20] sm:$0xff] %v167
    %174 = vst [vmem:[#allocation5 + $0x28] sm:$0xff] %v168
    // Predicated region
    $region10: #{tpu_custom_call.1} parent=1 // pred_check
      _
    $region11: #{tpu_custom_call.1} parent=1 // pred_check_branch
      %176 = sbr.rel (0) target = $region13
    $region12: #{tpu_custom_call.1} parent=1 // pred_region
      %178 = vsyncadd [#allocation4], 0
      %s179 = sshll.u32 [#allocation5], 4
      %s180 = int_to_ptr.vmem [resolvable:$true] %s179
      %s181 = sshll.u32 %s1, 4
      %s182 = int_to_ptr.hbm [resolvable:$true] %s181
      %187 = dma.vmem_to_hbm [thread:$0]  %s180, 768, %s182, [#allocation4], 128, 128, 8
    $region13: #{tpu_custom_call.1} parent=1 // pred_fallthru
      _
    // Predicated region
    $region14: #{tpu_custom_call.1} parent=1 // pred_check
      _
    $region15: #{tpu_custom_call.1} parent=1 // pred_check_branch
      %189 = sbr.rel (0) target = $region17
    $region16: #{tpu_custom_call.1} parent=1 // pred_region
      %191 = dma.done [#allocation4], 768
    $region17: #{tpu_custom_call.1} parent=1 // pred_fallthru
      _
    %192 = vsyncpa [#allocation3], 1
    %193 = vsyncpa [#allocation4], 1

</llo_original>
